<compile_context>
chip_gen: v7x
topology: tpu7x:2x2x1
jax: 0.10.0
libtpu: 0.0.40
codegen_flags: <defaults>
</compile_context>

<pallas_src>
import math

import jax
import jax.numpy as jnp
import numpy as np
from jax.experimental import pallas as pl
from jax.experimental.pallas import tpu as pltpu

_LANE = 128
_SUBLANE = 8
_MAX_TILE_BATCH = 512   # sweep-chosen upper bound on the batch tile
_MIN_TILE_BATCH = 128


def _round_up(n, m):
    return ((n + m - 1) // m) * m


def _celu(x, alpha=1.0):
    # CELU(x) = max(0, x) + min(0, alpha*(exp(x/alpha) - 1)).
    # Clamp the exp argument to <= 0 so the discarded branch never overflows
    # (also keeps garbage rows of a ragged last block finite).
    neg = alpha * (jnp.exp(jnp.minimum(x, 0.0) / alpha) - 1.0)
    return jnp.where(x > 0, x, neg)


def _ffnn_kernel(x_ref, *refs):
    """Fused FFNN forward for one batch tile.

    refs = (w1, b1, [w2_i, b2_i]..., w3, b3, out_ref).
    Weights: bf16 [in_padded, out_padded (last layer: output_dim)].
    Biases:  f32  [1, out_padded].
    Matmuls run bf16 x bf16 with f32 accumulation; bias/activation math is f32,
    then the activated value is cast to bf16 once (epilogue) for the next dot.
    """
    out_ref = refs[-1]
    param_refs = refs[:-1]
    n_linear = len(param_refs) // 2

    h = x_ref[...].astype(jnp.bfloat16)               # (tb, in) bf16
    for i in range(n_linear):
        w = param_refs[2 * i][...]                    # (in_p, out_p) bf16
        b = param_refs[2 * i + 1][...]                # (1, out_p)   f32
        acc = jnp.dot(h, w, preferred_element_type=jnp.float32) + b
        if i == 0:
            act = jnp.maximum(acc, 0.0)               # ReLU after fc1
        elif i < n_linear - 1:
            act = jnp.tanh(acc)                       # Tanh after each fc2
        else:
            act = _celu(acc)                          # CELU after fc3
        h = act if i == n_linear - 1 else act.astype(jnp.bfloat16)
    out_ref[...] = h.astype(out_ref.dtype)            # (tb, output_dim)


class FeedForwardNN:
    """JAX/Pallas port of the PyTorch FeedForwardNN module."""

    def __init__(self, input_dim, hidden_dim, hid_layer, output_dim, key):
        descent_rate = 0.75
        self.hidden_layer = hid_layer
        self.hidden_dim_list = [
            int(np.floor(hidden_dim * pow(descent_rate, t))) for t in range(hid_layer)
        ]
        self.input_dim = input_dim
        self.output_dim = output_dim

        # Layer (in, out) sizes: fc1, fc2[0..hid_layer-2], fc3
        dims = [(input_dim, self.hidden_dim_list[0])]
        for layer in range(hid_layer - 1):
            dims.append((self.hidden_dim_list[layer], self.hidden_dim_list[layer + 1]))
        dims.append((self.hidden_dim_list[-1], output_dim))
        self.layer_dims = dims
        n_linear = len(dims)

        # PyTorch-style init U(-1/sqrt(fan_in), +1/sqrt(fan_in)).
        # Hidden out-dims are zero-padded to 128 lanes (lane-dense intermediate
        # matmuls); padded lanes stay exactly 0 through ReLU/tanh so they are
        # semantics-preserving. The LAST layer keeps its true out-dim so the
        # kernel writes a narrow (batch, output_dim) result directly.
        flat_params = []
        ref_params = []
        prev_in = input_dim
        for idx, (fan_in, fan_out) in enumerate(dims):
            key, kw, kb = jax.random.split(key, 3)
            bound = 1.0 / math.sqrt(fan_in)
            w = jax.random.uniform(kw, (fan_in, fan_out), jnp.float32, -bound, bound)
            b = jax.random.uniform(kb, (1, fan_out), jnp.float32, -bound, bound)
            ref_params.append((w, b))
            out_p = fan_out if idx == n_linear - 1 else _round_up(fan_out, _LANE)
            w_p = (jnp.zeros((prev_in, out_p), jnp.float32)
                   .at[:fan_in, :fan_out].set(w)
                   .astype(jnp.bfloat16))
            b_p = jnp.zeros((1, out_p), jnp.float32).at[:, :fan_out].set(b)
            flat_params.extend([w_p, b_p])
            prev_in = out_p
        self.flat_params = tuple(flat_params)
        self.ref_params = tuple(ref_params)   # unpadded f32, for reference check

        self._fwd = jax.jit(self._forward)

    @staticmethod
    def _pick_tile(batch):
        # Biggest tile up to _MAX_TILE_BATCH, but keep >= 2 grid steps whenever
        # there is enough work so both v7x TensorCores get batch tiles
        # (neutral on single-TC v5e/v6e); never exceed the (8-rounded) batch.
        pb = _round_up(batch, _SUBLANE)
        half = _round_up(pl.cdiv(pb, 2), _SUBLANE)
        tb = min(_MAX_TILE_BATCH, max(_MIN_TILE_BATCH, half))
        return min(tb, pb)

    def _forward(self, x, flat_params):
        batch, in_dim = x.shape
        tb = self._pick_tile(batch)
        grid = (pl.cdiv(batch, tb),)          # ragged last block, masked on store

        x_spec = pl.BlockSpec((tb, in_dim), lambda i: (i, 0))
        # Weights/biases: whole-array resident VMEM refs (single-buffered, no
        # per-step re-DMA, no double-buffer VMEM cost).
        param_specs = [pl.BlockSpec(memory_space=pltpu.MemorySpace.VMEM)
                       for _ in flat_params]
        out_spec = pl.BlockSpec((tb, self.output_dim), lambda i: (i, 0))

        # Explicit VMEM budget: resident params + double-buffered x/out tiles +
        # live intermediates + headroom (never below the 32 MiB scoped default).
        param_bytes = sum(int(np.prod(p.shape)) * p.dtype.itemsize
                          for p in flat_params)
        max_width = max(w.shape[1] for w in flat_params[0::2])
        act_bytes = 2 * tb * (in_dim + self.output_dim) * 4
        inter_bytes = 6 * tb * max_width * 4
        vmem_limit = int(min(max(param_bytes + act_bytes + inter_bytes + (4 << 20),
                                 32 << 20), 64 << 20))

        flops = 2 * batch * sum(w.shape[0] * w.shape[1] for w in flat_params[0::2])
        transcendentals = batch * (sum(w.shape[1] for w in flat_params[2:-2:2])
                                   + self.output_dim)
        bytes_accessed = (batch * in_dim * 4
                          + batch * self.output_dim * 4
                          + param_bytes)

        return pl.pallas_call(
            _ffnn_kernel,
            out_shape=jax.ShapeDtypeStruct((batch, self.output_dim), jnp.float32),
            grid=grid,
            in_specs=[x_spec] + param_specs,
            out_specs=out_spec,
            compiler_params=pltpu.CompilerParams(
                dimension_semantics=("parallel",),     # batch tiles -> both TCs on v7x
                vmem_limit_bytes=vmem_limit,
            ),
            cost_estimate=pl.CostEstimate(
                flops=flops,
                transcendentals=transcendentals,
                bytes_accessed=bytes_accessed,
            ),
        )(x, *flat_params)

    def __call__(self, x):
        return self._fwd(x, self.flat_params)


if __name__ == "__main__":
    key = jax.random.PRNGKey(0)
    key, k_model, k_x = jax.random.split(key, 3)

    input_dim, hidden_dim, hid_layer, output_dim = 16, 32, 3, 2
    batch = 256  # small, but enough for 2 batch tiles

    model = FeedForwardNN(input_dim, hidden_dim, hid_layer, output_dim, k_model)
    x = jax.random.normal(k_x, (batch, input_dim), dtype=jnp.float32)

    out = jax.block_until_ready(model(x))
    assert out.shape == (batch, output_dim)

    def ref_bf16(xv):
        # Mirrors the kernel's numerics (padded bf16 weights, bf16 activations
        # between layers, f32 accumulation / bias / activation math).
        n_linear = len(model.flat_params) // 2
        h = xv.astype(jnp.bfloat16)
        for i in range(n_linear):
            w = model.flat_params[2 * i]
            b = model.flat_params[2 * i + 1]
            acc = jnp.dot(h, w, preferred_element_type=jnp.float32) + b
            if i == 0:
                act = jnp.maximum(acc, 0.0)
            elif i < n_linear - 1:
                act = jnp.tanh(acc)
            else:
                act = _celu(acc)
            h = act if i == n_linear - 1 else act.astype(jnp.bfloat16)
        return h

    def ref_f32(xv):
        # Pure-f32 reference of the original PyTorch forward (unpadded weights).
        n_linear = len(model.ref_params)
        h = xv
        for i, (w, b) in enumerate(model.ref_params):
            h = jnp.dot(h, w) + b
            if i == 0:
                h = jnp.maximum(h, 0.0)
            elif i < n_linear - 1:
                h = jnp.tanh(h)
            else:
                h = _celu(h)
        return h

    np.testing.assert_allclose(np.asarray(out), np.asarray(ref_bf16(x)),
                               rtol=1e-3, atol=1e-3)
    # Looser tolerance vs. full-f32 math: validates the bf16 weight choice.
    np.testing.assert_allclose(np.asarray(out), np.asarray(ref_f32(x)),
                               rtol=3e-2, atol=3e-2)

    # Ragged batch (not a multiple of the tile): exercises the masked last block.
    x2 = jax.random.normal(jax.random.PRNGKey(1), (200, input_dim), jnp.float32)
    out2 = jax.block_until_ready(model(x2))
    assert out2.shape == (200, output_dim)
    np.testing.assert_allclose(np.asarray(out2), np.asarray(ref_bf16(x2)),
                               rtol=1e-3, atol=1e-3)

    print("KERNEL_OK")
</pallas_src>

<mosaic_0001>
module attributes {stable_mosaic.version = 11 : i64} {
  func.func @_ffnn_kernel(%arg0: i32, %arg1: memref<128x16xf32, #tpu.memory_space<vmem>>, %arg2: memref<16x128xbf16, #tpu.memory_space<vmem>>, %arg3: memref<1x128xf32, #tpu.memory_space<vmem>>, %arg4: memref<128x128xbf16, #tpu.memory_space<vmem>>, %arg5: memref<1x128xf32, #tpu.memory_space<vmem>>, %arg6: memref<128x128xbf16, #tpu.memory_space<vmem>>, %arg7: memref<1x128xf32, #tpu.memory_space<vmem>>, %arg8: memref<128x2xbf16, #tpu.memory_space<vmem>>, %arg9: memref<1x2xf32, #tpu.memory_space<vmem>>, %arg10: memref<128x2xf32, #tpu.memory_space<vmem>>) attributes {dimension_semantics = [#tpu.dimension_semantics<parallel>], iteration_bounds = array<i64: 2>, scalar_prefetch = 0 : i64, scratch_operands = 0 : i64, tpu.core_type = #tpu.core_type<tc>, window_params = [{transform_indices = @transform_0, window_bounds = array<i64: 128, 16>}, {pipeline_mode = #tpu.pipeline_mode<synchronous>, transform_indices = @transform_1, window_bounds = array<i64: 16, 128>}, {pipeline_mode = #tpu.pipeline_mode<synchronous>, transform_indices = @transform_2, window_bounds = array<i64: 1, 128>}, {pipeline_mode = #tpu.pipeline_mode<synchronous>, transform_indices = @transform_3, window_bounds = array<i64: 128, 128>}, {pipeline_mode = #tpu.pipeline_mode<synchronous>, transform_indices = @transform_4, window_bounds = array<i64: 1, 128>}, {pipeline_mode = #tpu.pipeline_mode<synchronous>, transform_indices = @transform_5, window_bounds = array<i64: 128, 128>}, {pipeline_mode = #tpu.pipeline_mode<synchronous>, transform_indices = @transform_6, window_bounds = array<i64: 1, 128>}, {pipeline_mode = #tpu.pipeline_mode<synchronous>, transform_indices = @transform_7, window_bounds = array<i64: 128, 2>}, {pipeline_mode = #tpu.pipeline_mode<synchronous>, transform_indices = @transform_8, window_bounds = array<i64: 1, 2>}, {transform_indices = @transform_9, window_bounds = array<i64: 128, 2>}]} {
    %c0 = arith.constant 0 : index
    %c0_0 = arith.constant 0 : index
    %0 = vector.load %arg1[%c0, %c0_0] : memref<128x16xf32, #tpu.memory_space<vmem>>, vector<128x16xf32>
    %1 = arith.truncf %0 : vector<128x16xf32> to vector<128x16xbf16>
    %c0_1 = arith.constant 0 : index
    %c0_2 = arith.constant 0 : index
    %2 = vector.load %arg2[%c0_1, %c0_2] : memref<16x128xbf16, #tpu.memory_space<vmem>>, vector<16x128xbf16>
    %c0_3 = arith.constant 0 : index
    %c0_4 = arith.constant 0 : index
    %3 = vector.load %arg3[%c0_3, %c0_4] : memref<1x128xf32, #tpu.memory_space<vmem>>, vector<1x128xf32>
    %cst = arith.constant dense<0.000000e+00> : vector<128x128xf32>
    %4 = tpu.matmul %1, %2, %cst {dimension_numbers = #tpu.dot_dimension_numbers<[1], [0], [0], [1], [0, 0, 1, 1], [], []>} : vector<128x16xbf16>, vector<16x128xbf16>, vector<128x128xf32> -> vector<128x128xf32>
    %5 = vector.broadcast %3 : vector<1x128xf32> to vector<128x128xf32>
    %6 = arith.addf %4, %5 : vector<128x128xf32>
    %cst_5 = arith.constant 0.000000e+00 : f32
    %7 = vector.broadcast %cst_5 : f32 to vector<128x128xf32>
    %8 = arith.maximumf %6, %7 : vector<128x128xf32>
    %9 = arith.truncf %8 : vector<128x128xf32> to vector<128x128xbf16>
    %c0_6 = arith.constant 0 : index
    %c0_7 = arith.constant 0 : index
    %10 = vector.load %arg4[%c0_6, %c0_7] : memref<128x128xbf16, #tpu.memory_space<vmem>>, vector<128x128xbf16>
    %c0_8 = arith.constant 0 : index
    %c0_9 = arith.constant 0 : index
    %11 = vector.load %arg5[%c0_8, %c0_9] : memref<1x128xf32, #tpu.memory_space<vmem>>, vector<1x128xf32>
    %cst_10 = arith.constant dense<0.000000e+00> : vector<128x128xf32>
    %12 = tpu.matmul %9, %10, %cst_10 {dimension_numbers = #tpu.dot_dimension_numbers<[1], [0], [0], [1], [0, 0, 1, 1], [], []>} : vector<128x128xbf16>, vector<128x128xbf16>, vector<128x128xf32> -> vector<128x128xf32>
    %13 = vector.broadcast %11 : vector<1x128xf32> to vector<128x128xf32>
    %14 = arith.addf %12, %13 : vector<128x128xf32>
    %15 = math.tanh %14 : vector<128x128xf32>
    %16 = arith.truncf %15 : vector<128x128xf32> to vector<128x128xbf16>
    %c0_11 = arith.constant 0 : index
    %c0_12 = arith.constant 0 : index
    %17 = vector.load %arg6[%c0_11, %c0_12] : memref<128x128xbf16, #tpu.memory_space<vmem>>, vector<128x128xbf16>
    %c0_13 = arith.constant 0 : index
    %c0_14 = arith.constant 0 : index
    %18 = vector.load %arg7[%c0_13, %c0_14] : memref<1x128xf32, #tpu.memory_space<vmem>>, vector<1x128xf32>
    %cst_15 = arith.constant dense<0.000000e+00> : vector<128x128xf32>
    %19 = tpu.matmul %16, %17, %cst_15 {dimension_numbers = #tpu.dot_dimension_numbers<[1], [0], [0], [1], [0, 0, 1, 1], [], []>} : vector<128x128xbf16>, vector<128x128xbf16>, vector<128x128xf32> -> vector<128x128xf32>
    %20 = vector.broadcast %18 : vector<1x128xf32> to vector<128x128xf32>
    %21 = arith.addf %19, %20 : vector<128x128xf32>
    %22 = math.tanh %21 : vector<128x128xf32>
    %23 = arith.truncf %22 : vector<128x128xf32> to vector<128x128xbf16>
    %c0_16 = arith.constant 0 : index
    %c0_17 = arith.constant 0 : index
    %24 = vector.load %arg8[%c0_16, %c0_17] : memref<128x2xbf16, #tpu.memory_space<vmem>>, vector<128x2xbf16>
    %c0_18 = arith.constant 0 : index
    %c0_19 = arith.constant 0 : index
    %25 = vector.load %arg9[%c0_18, %c0_19] : memref<1x2xf32, #tpu.memory_space<vmem>>, vector<1x2xf32>
    %cst_20 = arith.constant dense<0.000000e+00> : vector<128x2xf32>
    %26 = tpu.matmul %23, %24, %cst_20 {dimension_numbers = #tpu.dot_dimension_numbers<[1], [0], [0], [1], [0, 0, 1, 1], [], []>} : vector<128x128xbf16>, vector<128x2xbf16>, vector<128x2xf32> -> vector<128x2xf32>
    %27 = vector.broadcast %25 : vector<1x2xf32> to vector<128x2xf32>
    %28 = arith.addf %26, %27 : vector<128x2xf32>
    %cst_21 = arith.constant 0.000000e+00 : f32
    %29 = vector.broadcast %cst_21 : f32 to vector<128x2xf32>
    %30 = arith.minimumf %28, %29 : vector<128x2xf32>
    %cst_22 = arith.constant 1.000000e+00 : f32
    %31 = vector.broadcast %cst_22 : f32 to vector<128x2xf32>
    %32 = arith.divf %30, %31 : vector<128x2xf32>
    %33 = math.exp %32 : vector<128x2xf32>
    %cst_23 = arith.constant 1.000000e+00 : f32
    %34 = vector.broadcast %cst_23 : f32 to vector<128x2xf32>
    %35 = arith.subf %33, %34 : vector<128x2xf32>
    %cst_24 = arith.constant 1.000000e+00 : f32
    %36 = vector.broadcast %cst_24 : f32 to vector<128x2xf32>
    %37 = arith.mulf %36, %35 : vector<128x2xf32>
    %cst_25 = arith.constant 0.000000e+00 : f32
    %38 = vector.broadcast %cst_25 : f32 to vector<128x2xf32>
    %39 = arith.cmpf ogt, %28, %38 : vector<128x2xf32>
    %40 = arith.select %39, %28, %37 : vector<128x2xi1>, vector<128x2xf32>
    %c0_26 = arith.constant 0 : index
    %c0_27 = arith.constant 0 : index
    %41 = vector.load %arg10[%c0_26, %c0_27] : memref<128x2xf32, #tpu.memory_space<vmem>>, vector<128x2xf32>
    tpu.vector_store %arg10[%c0_26, %c0_27], %40 {strides = array<i32>} : memref<128x2xf32, #tpu.memory_space<vmem>>, vector<128x2xf32>,
    return
  }
  func.func @transform_0(%arg0: i32) -> (i32, i32) {
    %c0_i32 = arith.constant 0 : i32
    %c0_i32_0 = arith.constant 0 : i32
    return %arg0, %c0_i32 : i32, i32
  }
  func.func @transform_1(%arg0: i32) -> (i32, i32) {
    %c0_i32 = arith.constant 0 : i32
    %c0_i32_0 = arith.constant 0 : i32
    %c0_i32_1 = arith.constant 0 : i32
    return %c0_i32, %c0_i32_0 : i32, i32
  }
  func.func @transform_2(%arg0: i32) -> (i32, i32) {
    %c0_i32 = arith.constant 0 : i32
    %c0_i32_0 = arith.constant 0 : i32
    %c0_i32_1 = arith.constant 0 : i32
    return %c0_i32, %c0_i32_0 : i32, i32
  }
  func.func @transform_3(%arg0: i32) -> (i32, i32) {
    %c0_i32 = arith.constant 0 : i32
    %c0_i32_0 = arith.constant 0 : i32
    %c0_i32_1 = arith.constant 0 : i32
    return %c0_i32, %c0_i32_0 : i32, i32
  }
  func.func @transform_4(%arg0: i32) -> (i32, i32) {
    %c0_i32 = arith.constant 0 : i32
    %c0_i32_0 = arith.constant 0 : i32
    %c0_i32_1 = arith.constant 0 : i32
    return %c0_i32, %c0_i32_0 : i32, i32
  }
  func.func @transform_5(%arg0: i32) -> (i32, i32) {
    %c0_i32 = arith.constant 0 : i32
    %c0_i32_0 = arith.constant 0 : i32
    %c0_i32_1 = arith.constant 0 : i32
    return %c0_i32, %c0_i32_0 : i32, i32
  }
  func.func @transform_6(%arg0: i32) -> (i32, i32) {
    %c0_i32 = arith.constant 0 : i32
    %c0_i32_0 = arith.constant 0 : i32
    %c0_i32_1 = arith.constant 0 : i32
    return %c0_i32, %c0_i32_0 : i32, i32
  }
  func.func @transform_7(%arg0: i32) -> (i32, i32) {
    %c0_i32 = arith.constant 0 : i32
    %c0_i32_0 = arith.constant 0 : i32
    %c0_i32_1 = arith.constant 0 : i32
    return %c0_i32, %c0_i32_0 : i32, i32
  }
  func.func @transform_8(%arg0: i32) -> (i32, i32) {
    %c0_i32 = arith.constant 0 : i32
    %c0_i32_0 = arith.constant 0 : i32
    %c0_i32_1 = arith.constant 0 : i32
    return %c0_i32, %c0_i32_0 : i32, i32
  }
  func.func @transform_9(%arg0: i32) -> (i32, i32) {
    %c0_i32 = arith.constant 0 : i32
    %c0_i32_0 = arith.constant 0 : i32
    return %arg0, %c0_i32 : i32, i32
  }
}

</mosaic_0001>

<llo_original>
// kernel: _forward.1
$region0: #{_forward.1}
  #allocation0 [shape = 'u32[]', space=smem, size = 0x4, offset = 0x4, fixed_abs, tag = 'smem constant byte address 0x4 - core index']
  #allocation1 [shape = 'u32[144,128]{1,0:T(1,128)}', space=vmem, size = 0x12000, scoped, tag = 'internal scratch']
  %s0 = inlined_call_operand.vmem [shape: f32[256,16], index: 0, kind: input, shape index: {}]
  %s1 = inlined_call_operand.vmem [shape: bf16[16,128], index: 1, kind: input, shape index: {}]
  %s2 = inlined_call_operand.vmem [shape: f32[1,128], index: 2, kind: input, shape index: {}]
  %s3 = inlined_call_operand.vmem [shape: bf16[128,128], index: 3, kind: input, shape index: {}]
  %s4 = inlined_call_operand.vmem [shape: f32[1,128], index: 4, kind: input, shape index: {}]
  %s5 = inlined_call_operand.vmem [shape: bf16[128,128], index: 5, kind: input, shape index: {}]
  %s6 = inlined_call_operand.vmem [shape: f32[1,128], index: 6, kind: input, shape index: {}]
  %s7 = inlined_call_operand.vmem [shape: bf16[128,2], index: 7, kind: input, shape index: {}]
  %s8 = inlined_call_operand.vmem [shape: f32[1,2], index: 8, kind: input, shape index: {}]
  %s9 = inlined_call_operand.vmem [shape: f32[256,2], index: 9, kind: output, shape index: {}]
  %s10 = sld [smem:[#allocation0]]
  $region69: #{_forward.1} parent=0
    _
  %s12 = ssub.s32 1, %s10
  %s13 = scalar_select 0, %s12, %s10
  loop: start=0, step=1, limit=4
  $region2: #{_forward.1} parent=0 // loop_pre_header
    _
  $region3: #{_forward.1} parent=0 // loop_header
    %s15 = sphi 0, %s19
    %p16 = scmp.ge.s32.totalorder %s15, 4
    %s25 = sphi 0, %s27
    %s28 = sphi 0, %s25
    %s29 = sphi 0, %s28
    %s45 = sphi 0, %s29
    %s49 = sphi 0, %s49
    %s51 = sphi 0, %s49
    %s52 = sphi 0, %s51
    %s66 = sphi 0, %s52
    %s70 = sphi 0, %s70
    %s72 = sphi 0, %s70
    %s73 = sphi 0, %s72
    %s87 = sphi 0, %s73
    %s91 = sphi 0, %s91
    %s93 = sphi 0, %s91
    %s94 = sphi 0, %s93
    %s108 = sphi 0, %s94
    %s112 = sphi 0, %s112
    %s114 = sphi 0, %s112
    %s115 = sphi 0, %s114
    %s129 = sphi 0, %s115
    %s133 = sphi 0, %s133
    %s135 = sphi 0, %s133
    %s136 = sphi 0, %s135
    %s150 = sphi 0, %s136
    %s154 = sphi 0, %s154
    %s156 = sphi 0, %s154
    %s157 = sphi 0, %s156
    %s171 = sphi 0, %s157
    %s175 = sphi 0, %s175
    %s177 = sphi 0, %s175
    %s178 = sphi 0, %s177
    %s192 = sphi 0, %s178
    %s196 = sphi 0, %s196
    %s198 = sphi 0, %s196
    %s199 = sphi 0, %s198
    %s213 = sphi 0, %s199
    %s219 = sphi 0, %s221
    %s222 = sphi 0, %s219
    %s223 = sphi 0, %s222
    %s239 = sphi 0, %s223
  $region4: #{_forward.1} parent=0 // loop_header_branch
    %18 = sbr.rel (%p16) target = $region8
  $region5: #{_forward.1} parent=0 // loop_body
    %s20 = ssub.s32 %s15, 1
    %s21 = ssub.s32 %s15, 2
    %s22 = sadd.s32 %s15, 1
    %s23 = ssub.s32 %s15, %s22
    %p24 = scmp.eq.s32.totalorder %s23, 0
    %s26 = sadd.s32 %s25, 1
    %s27 = scalar_select %p24, %s25, %s26
    %p30 = pneg %p24
    %p31 = scmp.eq.s32.totalorder %s15, 1
    %p32 = por %p30, %p31
    %p33 = scmp.ne.s32.totalorder %s25, %s28
    %p34 = scmp.eq.s32.totalorder %s15, 0
    %p35 = por %p33, %p34
    %p36 = scmp.ne.s32.totalorder %s25, %s28
    %p37 = scmp.eq.s32.totalorder %s20, 1
    %p38 = por %p36, %p37
    %p39 = scmp.ne.s32.totalorder %s28, %s29
    %p40 = scmp.eq.s32.totalorder %s20, 0
    %p41 = por %p39, %p40
    %p42 = scmp.ne.s32.totalorder %s28, %s29
    %p43 = scmp.eq.s32.totalorder %s21, 1
    %p44 = por %p42, %p43
    %p46 = scmp.ne.s32.totalorder %s29, %s45
    %p47 = scmp.eq.s32.totalorder %s21, 0
    %p48 = por %p46, %p47
    %s50 = sadd.s32 %s49, 1
    %p53 = scmp.eq.s32.totalorder %s15, 1
    %p54 = scmp.ne.s32.totalorder %s49, %s51
    %p55 = scmp.eq.s32.totalorder %s15, 0
    %p56 = por %p54, %p55
    %p57 = scmp.ne.s32.totalorder %s49, %s51
    %p58 = scmp.eq.s32.totalorder %s20, 1
    %p59 = por %p57, %p58
    %p60 = scmp.ne.s32.totalorder %s51, %s52
    %p61 = scmp.eq.s32.totalorder %s20, 0
    %p62 = por %p60, %p61
    %p63 = scmp.ne.s32.totalorder %s51, %s52
    %p64 = scmp.eq.s32.totalorder %s21, 1
    %p65 = por %p63, %p64
    %p67 = scmp.ne.s32.totalorder %s52, %s66
    %p68 = scmp.eq.s32.totalorder %s21, 0
    %p69 = por %p67, %p68
    %s71 = sadd.s32 %s70, 1
    %p74 = scmp.eq.s32.totalorder %s15, 1
    %p75 = scmp.ne.s32.totalorder %s70, %s72
    %p76 = scmp.eq.s32.totalorder %s15, 0
    %p77 = por %p75, %p76
    %p78 = scmp.ne.s32.totalorder %s70, %s72
    %p79 = scmp.eq.s32.totalorder %s20, 1
    %p80 = por %p78, %p79
    %p81 = scmp.ne.s32.totalorder %s72, %s73
    %p82 = scmp.eq.s32.totalorder %s20, 0
    %p83 = por %p81, %p82
    %p84 = scmp.ne.s32.totalorder %s72, %s73
    %p85 = scmp.eq.s32.totalorder %s21, 1
    %p86 = por %p84, %p85
    %p88 = scmp.ne.s32.totalorder %s73, %s87
    %p89 = scmp.eq.s32.totalorder %s21, 0
    %p90 = por %p88, %p89
    %s92 = sadd.s32 %s91, 1
    %p95 = scmp.eq.s32.totalorder %s15, 1
    %p96 = scmp.ne.s32.totalorder %s91, %s93
    %p97 = scmp.eq.s32.totalorder %s15, 0
    %p98 = por %p96, %p97
    %p99 = scmp.ne.s32.totalorder %s91, %s93
    %p100 = scmp.eq.s32.totalorder %s20, 1
    %p101 = por %p99, %p100
    %p102 = scmp.ne.s32.totalorder %s93, %s94
    %p103 = scmp.eq.s32.totalorder %s20, 0
    %p104 = por %p102, %p103
    %p105 = scmp.ne.s32.totalorder %s93, %s94
    %p106 = scmp.eq.s32.totalorder %s21, 1
    %p107 = por %p105, %p106
    %p109 = scmp.ne.s32.totalorder %s94, %s108
    %p110 = scmp.eq.s32.totalorder %s21, 0
    %p111 = por %p109, %p110
    %s113 = sadd.s32 %s112, 1
    %p116 = scmp.eq.s32.totalorder %s15, 1
    %p117 = scmp.ne.s32.totalorder %s112, %s114
    %p118 = scmp.eq.s32.totalorder %s15, 0
    %p119 = por %p117, %p118
    %p120 = scmp.ne.s32.totalorder %s112, %s114
    %p121 = scmp.eq.s32.totalorder %s20, 1
    %p122 = por %p120, %p121
    %p123 = scmp.ne.s32.totalorder %s114, %s115
    %p124 = scmp.eq.s32.totalorder %s20, 0
    %p125 = por %p123, %p124
    %p126 = scmp.ne.s32.totalorder %s114, %s115
    %p127 = scmp.eq.s32.totalorder %s21, 1
    %p128 = por %p126, %p127
    %p130 = scmp.ne.s32.totalorder %s115, %s129
    %p131 = scmp.eq.s32.totalorder %s21, 0
    %p132 = por %p130, %p131
    %s134 = sadd.s32 %s133, 1
    %p137 = scmp.eq.s32.totalorder %s15, 1
    %p138 = scmp.ne.s32.totalorder %s133, %s135
    %p139 = scmp.eq.s32.totalorder %s15, 0
    %p140 = por %p138, %p139
    %p141 = scmp.ne.s32.totalorder %s133, %s135
    %p142 = scmp.eq.s32.totalorder %s20, 1
    %p143 = por %p141, %p142
    %p144 = scmp.ne.s32.totalorder %s135, %s136
    %p145 = scmp.eq.s32.totalorder %s20, 0
    %p146 = por %p144, %p145
    %p147 = scmp.ne.s32.totalorder %s135, %s136
    %p148 = scmp.eq.s32.totalorder %s21, 1
    %p149 = por %p147, %p148
    %p151 = scmp.ne.s32.totalorder %s136, %s150
    %p152 = scmp.eq.s32.totalorder %s21, 0
    %p153 = por %p151, %p152
    %s155 = sadd.s32 %s154, 1
    %p158 = scmp.eq.s32.totalorder %s15, 1
    %p159 = scmp.ne.s32.totalorder %s154, %s156
    %p160 = scmp.eq.s32.totalorder %s15, 0
    %p161 = por %p159, %p160
    %p162 = scmp.ne.s32.totalorder %s154, %s156
    %p163 = scmp.eq.s32.totalorder %s20, 1
    %p164 = por %p162, %p163
    %p165 = scmp.ne.s32.totalorder %s156, %s157
    %p166 = scmp.eq.s32.totalorder %s20, 0
    %p167 = por %p165, %p166
    %p168 = scmp.ne.s32.totalorder %s156, %s157
    %p169 = scmp.eq.s32.totalorder %s21, 1
    %p170 = por %p168, %p169
    %p172 = scmp.ne.s32.totalorder %s157, %s171
    %p173 = scmp.eq.s32.totalorder %s21, 0
    %p174 = por %p172, %p173
    %s176 = sadd.s32 %s175, 1
    %p179 = scmp.eq.s32.totalorder %s15, 1
    %p180 = scmp.ne.s32.totalorder %s175, %s177
    %p181 = scmp.eq.s32.totalorder %s15, 0
    %p182 = por %p180, %p181
    %p183 = scmp.ne.s32.totalorder %s175, %s177
    %p184 = scmp.eq.s32.totalorder %s20, 1
    %p185 = por %p183, %p184
    %p186 = scmp.ne.s32.totalorder %s177, %s178
    %p187 = scmp.eq.s32.totalorder %s20, 0
    %p188 = por %p186, %p187
    %p189 = scmp.ne.s32.totalorder %s177, %s178
    %p190 = scmp.eq.s32.totalorder %s21, 1
    %p191 = por %p189, %p190
    %p193 = scmp.ne.s32.totalorder %s178, %s192
    %p194 = scmp.eq.s32.totalorder %s21, 0
    %p195 = por %p193, %p194
    %s197 = sadd.s32 %s196, 1
    %p200 = scmp.eq.s32.totalorder %s15, 1
    %p201 = scmp.ne.s32.totalorder %s196, %s198
    %p202 = scmp.eq.s32.totalorder %s15, 0
    %p203 = por %p201, %p202
    %p204 = scmp.ne.s32.totalorder %s196, %s198
    %p205 = scmp.eq.s32.totalorder %s20, 1
    %p206 = por %p204, %p205
    %p207 = scmp.ne.s32.totalorder %s198, %s199
    %p208 = scmp.eq.s32.totalorder %s20, 0
    %p209 = por %p207, %p208
    %p210 = scmp.ne.s32.totalorder %s198, %s199
    %p211 = scmp.eq.s32.totalorder %s21, 1
    %p212 = por %p210, %p211
    %p214 = scmp.ne.s32.totalorder %s199, %s213
    %p215 = scmp.eq.s32.totalorder %s21, 0
    %p216 = por %p214, %p215
    %s217 = ssub.s32 %s15, %s22
    %p218 = scmp.eq.s32.totalorder %s217, 0
    %s220 = sadd.s32 %s219, 1
    %s221 = scalar_select %p218, %s219, %s220
    %p224 = pneg %p218
    %p225 = scmp.eq.s32.totalorder %s15, 1
    %p226 = por %p224, %p225
    %p227 = scmp.ne.s32.totalorder %s219, %s222
    %p228 = scmp.eq.s32.totalorder %s15, 0
    %p229 = por %p227, %p228
    %p230 = scmp.ne.s32.totalorder %s219, %s222
    %p231 = scmp.eq.s32.totalorder %s20, 1
    %p232 = por %p230, %p231
    %p233 = scmp.ne.s32.totalorder %s222, %s223
    %p234 = scmp.eq.s32.totalorder %s20, 0
    %p235 = por %p233, %p234
    %p236 = scmp.ne.s32.totalorder %s222, %s223
    %p237 = scmp.eq.s32.totalorder %s21, 1
    %p238 = por %p236, %p237
    %p240 = scmp.ne.s32.totalorder %s223, %s239
    %p241 = scmp.eq.s32.totalorder %s21, 0
    %p242 = por %p240, %p241
    %p243 = scmp.le.s32.totalorder 1, %s15
    %p244 = scmp.lt.s32.totalorder %s15, 3
    %p245 = pnand %p243, %p244
    %p246 = pneg %p245
    // Predicated region
    $region9: #{_forward.1} parent=5 // pred_check
      _
    $region10: #{_forward.1} parent=5 // pred_check_branch
      %248 = sbr.rel (%p245) target = $region12
    $region11: #{_forward.1} parent=5 // pred_region
      %s249 = ssub.s32 %s15, 1
      // Predicated region
      $region13: #{_forward.1} parent=11 // pred_check
        %p250 = pneg %p62
      $region14: #{_forward.1} parent=11 // pred_check_branch
        %252 = sbr.rel (%p250) target = $region16
      $region15: #{_forward.1} parent=11 // pred_region
        _
      $region16: #{_forward.1} parent=11 // pred_fallthru
        _
      // Predicated region
      $region17: #{_forward.1} parent=11 // pred_check
        %p253 = pneg %p83
      $region18: #{_forward.1} parent=11 // pred_check_branch
        %255 = sbr.rel (%p253) target = $region20
      $region19: #{_forward.1} parent=11 // pred_region
        _
      $region20: #{_forward.1} parent=11 // pred_fallthru
        _
      // Predicated region
      $region21: #{_forward.1} parent=11 // pred_check
        %p256 = pneg %p104
      $region22: #{_forward.1} parent=11 // pred_check_branch
        %258 = sbr.rel (%p256) target = $region24
      $region23: #{_forward.1} parent=11 // pred_region
        _
      $region24: #{_forward.1} parent=11 // pred_fallthru
        _
      // Predicated region
      $region25: #{_forward.1} parent=11 // pred_check
        %p259 = pneg %p125
      $region26: #{_forward.1} parent=11 // pred_check_branch
        %261 = sbr.rel (%p259) target = $region28
      $region27: #{_forward.1} parent=11 // pred_region
        _
      $region28: #{_forward.1} parent=11 // pred_fallthru
        _
      // Predicated region
      $region29: #{_forward.1} parent=11 // pred_check
        %p262 = pneg %p146
      $region30: #{_forward.1} parent=11 // pred_check_branch
        %264 = sbr.rel (%p262) target = $region32
      $region31: #{_forward.1} parent=11 // pred_region
        _
      $region32: #{_forward.1} parent=11 // pred_fallthru
        _
      // Predicated region
      $region33: #{_forward.1} parent=11 // pred_check
        %p265 = pneg %p167
      $region34: #{_forward.1} parent=11 // pred_check_branch
        %267 = sbr.rel (%p265) target = $region36
      $region35: #{_forward.1} parent=11 // pred_region
        _
      $region36: #{_forward.1} parent=11 // pred_fallthru
        _
      // Predicated region
      $region37: #{_forward.1} parent=11 // pred_check
        %p268 = pneg %p188
      $region38: #{_forward.1} parent=11 // pred_check_branch
        %270 = sbr.rel (%p268) target = $region40
      $region39: #{_forward.1} parent=11 // pred_region
        _
      $region40: #{_forward.1} parent=11 // pred_fallthru
        _
      // Predicated region
      $region41: #{_forward.1} parent=11 // pred_check
        %p271 = pneg %p209
      $region42: #{_forward.1} parent=11 // pred_check_branch
        %273 = sbr.rel (%p271) target = $region44
      $region43: #{_forward.1} parent=11 // pred_region
        _
      $region44: #{_forward.1} parent=11 // pred_fallthru
        _
    $region12: #{_forward.1} parent=5 // pred_fallthru
      _
    %p274 = scmp.lt.s32.totalorder %s15, 2
    // Predicated region
    $region45: #{_forward.1} parent=5 // pred_check
      %p275 = pneg %p274
    $region46: #{_forward.1} parent=5 // pred_check_branch
      %277 = sbr.rel (%p275) target = $region48
    $region47: #{_forward.1} parent=5 // pred_region
      // Predicated region
      $region49: #{_forward.1} parent=47 // pred_check
        %p278 = pneg %p35
      $region50: #{_forward.1} parent=47 // pred_check_branch
        %280 = sbr.rel (%p278) target = $region52
      $region51: #{_forward.1} parent=47 // pred_region
        %s281 = smul.u32 16, %s15
        %p282 = scmp.lt.s32.totalorder %s281, 31
        %s283 = scalar_select %p282, %s281, 31
        %s284 = smul.addr %s283, 8
        %s285 = scalar_lea.vmem %s0, %s284
        %s286 = smul.u32 16, %s15
      $region52: #{_forward.1} parent=47 // pred_fallthru
        _
    $region48: #{_forward.1} parent=5 // pred_fallthru
      _
    %p287 = scmp.le.s32.totalorder 1, %s15
    %p288 = scmp.lt.s32.totalorder %s15, 3
    %p289 = pnand %p287, %p288
    %p290 = pneg %p289
    // Predicated region
    $region53: #{_forward.1} parent=5 // pred_check
      _
    $region54: #{_forward.1} parent=5 // pred_check_branch
      %292 = sbr.rel (%p289) target = $region56
    $region55: #{_forward.1} parent=5 // pred_region
      %s293 = ssub.s32 %s15, 1
      %s294 = smul.u32 16, %s20
      %p295 = scmp.lt.s32.totalorder %s294, 31
      %s296 = scalar_select %p295, %s294, 31
      %s297 = smul.addr %s296, 8
      %s298 = scalar_lea.vmem %s0, %s297
      %p299 = pneg %p41
      %p300 = pneg %p38
      %p301 = pneg %p62
      %p302 = pneg %p59
      %p303 = pneg %p83
      %p304 = pneg %p80
      %p305 = pneg %p104
      %p306 = pneg %p101
      %p307 = pneg %p125
      %p308 = pneg %p122
      %p309 = pneg %p146
      %p310 = pneg %p143
      %p311 = pneg %p167
      %p312 = pneg %p164
      %p313 = pneg %p188
      %p314 = pneg %p185
      %p315 = pneg %p209
      %p316 = pneg %p206
      %p317 = pneg %p235
      %p318 = pneg %p232
      %s319 = smul.u32 16, %s20
      %p320 = scmp.lt.s32.totalorder %s319, 31
      %s321 = scalar_select %p320, %s319, 31
      %s322 = smul.addr %s321, 8
      %s323 = scalar_lea.vmem %s9, %s322
      %s324 = smul.u32 16, %s20
      %p325 = scmp.lt.s32.totalorder %s324, 31
      %s326 = scalar_select %p325, %s324, 31
      %s327 = smul.addr %s326, 8
      %s328 = scalar_lea.vmem %s0, %s327
      %s329 = smul.u32 16, %s20
      %s330 = smul.u32 16, %s20
      %p331 = scmp.lt.s32.totalorder %s330, 31
      %s332 = scalar_select %p331, %s330, 31
      %s333 = smul.addr %s332, 8
      %s334 = scalar_lea.vmem %s9, %s333
      %s335 = smul.u32 16, %s20
      %v337 = vld [vmem:[%s328] sm:$0xff]
      %v338 = vld [vmem:[%s328 + $0x8] sm:$0xff]
      %v339 = vld [vmem:[%s328 + $0x10] sm:$0xff]
      %v340 = vld [vmem:[%s328 + $0x18] sm:$0xff]
      %v341 = vld [vmem:[%s328 + $0x20] sm:$0xff]
      %v342 = vld [vmem:[%s328 + $0x28] sm:$0xff]
      %v343 = vld [vmem:[%s328 + $0x30] sm:$0xff]
      %v344 = vld [vmem:[%s328 + $0x38] sm:$0xff]
      %v345 = vld [vmem:[%s328 + $0x40] sm:$0xff]
      %v346 = vld [vmem:[%s328 + $0x48] sm:$0xff]
      %v347 = vld [vmem:[%s328 + $0x50] sm:$0xff]
      %v348 = vld [vmem:[%s328 + $0x58] sm:$0xff]
      %v349 = vld [vmem:[%s328 + $0x60] sm:$0xff]
      %v350 = vld [vmem:[%s328 + $0x68] sm:$0xff]
      %v351 = vld [vmem:[%s328 + $0x70] sm:$0xff]
      %v352 = vld [vmem:[%s328 + $0x78] sm:$0xff]
      %v353 = vpack.c.bf16 %v338, %v337
      %v354 = vpack.c.bf16 %v340, %v339
      %v355 = vpack.c.bf16 %v342, %v341
      %v356 = vpack.c.bf16 %v344, %v343
      %v357 = vpack.c.bf16 %v346, %v345
      %v358 = vpack.c.bf16 %v348, %v347
      %v359 = vpack.c.bf16 %v350, %v349
      %v360 = vpack.c.bf16 %v352, %v351
      %v361 = vld [vmem:[%s1] sm:$0xf]
      %v362 = vld [vmem:[%s1 + $0x4] sm:$0xf]
      %v363 = vld [vmem:[%s2] sm:$0x1]
      %v365 = vlaneseq
      %v366 = vshrl.u32 %v365, 7
      %v367 = vsub.s32 0, %v366
      %v368 = vrot.slane %v363, %v367
      %v372 = vunpack.c.l.b16 %v361
      %v373 = vunpack.c.l.b16 %v362
      %v374 = vpack.c.b16 %v373, %v372
      %vm376 = vcmask 130048
      %v378 = vsel %vm376, %v353, 0
      %v381 = vsel %vm376, %v354, 0
      %v384 = vsel %vm376, %v355, 0
      %v387 = vsel %vm376, %v356, 0
      %v390 = vsel %vm376, %v357, 0
      %v393 = vsel %vm376, %v358, 0
      %v396 = vsel %vm376, %v359, 0
      %v399 = vsel %vm376, %v360, 0
      %401 = vmatprep.subr.bf16.mxu0 0
      %402 = vmatpush1.bf16.msra.mxu0 %v374
      %403 = vmatprep.subr.bf16.mxu0 0
      %404 = vmatpush1.bf16.msra.mxu0 0
      %405 = vmatprep.subr.bf16.mxu0 0
      %406 = vmatpush1.bf16.msra.mxu0 0
      %407 = vmatprep.subr.bf16.mxu0 0
      %408 = vmatpush1.bf16.msra.mxu0 0
      %409 = vmatprep.subr.bf16.mxu0 0
      %410 = vmatpush1.bf16.msra.mxu0 0
      %411 = vmatprep.subr.bf16.mxu0 0
      %412 = vmatpush1.bf16.msra.mxu0 0
      %413 = vmatprep.subr.bf16.mxu0 0
      %414 = vmatpush1.bf16.msra.mxu0 0
      %415 = vmatprep.subr.bf16.mxu0 0
      %416 = vmatpush1.bf16.msra.mxu0 0
      %417 = vmatprep.subr.bf16.mxu0 0
      %418 = vmatpush1.bf16.msra.mxu0 0
      %419 = vmatprep.subr.bf16.mxu0 0
      %420 = vmatpush1.bf16.msra.mxu0 0
      %421 = vmatprep.subr.bf16.mxu0 0
      %422 = vmatpush1.bf16.msra.mxu0 0
      %423 = vmatprep.subr.bf16.mxu0 0
      %424 = vmatpush1.bf16.msra.mxu0 0
      %425 = vmatprep.subr.bf16.mxu0 0
      %426 = vmatpush1.bf16.msra.mxu0 0
      %427 = vmatprep.subr.bf16.mxu0 0
      %428 = vmatpush1.bf16.msra.mxu0 0
      %429 = vmatprep.subr.bf16.mxu0 0
      %430 = vmatpush1.bf16.msra.mxu0 0
      %431 = vmatprep.subr.bf16.mxu0 0
      %432 = vmatpush1.bf16.msra.mxu0 0
      %433 = vmatprep.mubr.bf16.mxu0 0
      %434 = vmatmul.mubr.bf16.gmra.mrb[0].mxu0 %v378
      %v435 = vpop.f32.mrb[0].mxu0
      %v436 = vadd.f32 %v368, %v435
      %v437 = vpop.f32.mrb[0].mxu0
      %v438 = vpop.f32.mrb[0].mxu0
      %v439 = vadd.f32 %v368, %v438
      %v440 = vpop.f32.mrb[0].mxu0
      %441 = vmatprep.mubr.bf16.mxu0 0
      %442 = vmatmul.mubr.bf16.gmra.mrb[0].mxu0 %v381
      %v443 = vpop.f32.mrb[0].mxu0
      %v444 = vadd.f32 %v368, %v443
      %v445 = vpop.f32.mrb[0].mxu0
      %v446 = vpop.f32.mrb[0].mxu0
      %v447 = vadd.f32 %v368, %v446
      %v448 = vpop.f32.mrb[0].mxu0
      %449 = vmatprep.mubr.bf16.mxu0 0
      %450 = vmatmul.mubr.bf16.gmra.mrb[0].mxu0 %v384
      %v451 = vpop.f32.mrb[0].mxu0
      %v452 = vadd.f32 %v368, %v451
      %v453 = vpop.f32.mrb[0].mxu0
      %v454 = vpop.f32.mrb[0].mxu0
      %v455 = vadd.f32 %v368, %v454
      %v456 = vpop.f32.mrb[0].mxu0
      %457 = vmatprep.mubr.bf16.mxu0 0
      %458 = vmatmul.mubr.bf16.gmra.mrb[0].mxu0 %v387
      %v459 = vpop.f32.mrb[0].mxu0
      %v460 = vadd.f32 %v368, %v459
      %v461 = vpop.f32.mrb[0].mxu0
      %v462 = vpop.f32.mrb[0].mxu0
      %v463 = vadd.f32 %v368, %v462
      %v464 = vpop.f32.mrb[0].mxu0
      %465 = vmatprep.mubr.bf16.mxu0 0
      %466 = vmatmul.mubr.bf16.gmra.mrb[0].mxu0 %v390
      %v467 = vpop.f32.mrb[0].mxu0
      %v468 = vadd.f32 %v368, %v467
      %v469 = vpop.f32.mrb[0].mxu0
      %v470 = vpop.f32.mrb[0].mxu0
      %v471 = vadd.f32 %v368, %v470
      %v472 = vpop.f32.mrb[0].mxu0
      %473 = vmatprep.mubr.bf16.mxu0 0
      %474 = vmatmul.mubr.bf16.gmra.mrb[0].mxu0 %v393
      %v475 = vpop.f32.mrb[0].mxu0
      %v476 = vadd.f32 %v368, %v475
      %v477 = vpop.f32.mrb[0].mxu0
      %v478 = vpop.f32.mrb[0].mxu0
      %v479 = vadd.f32 %v368, %v478
      %v480 = vpop.f32.mrb[0].mxu0
      %481 = vmatprep.mubr.bf16.mxu0 0
      %482 = vmatmul.mubr.bf16.gmra.mrb[0].mxu0 %v396
      %v483 = vpop.f32.mrb[0].mxu0
      %v484 = vadd.f32 %v368, %v483
      %v485 = vpop.f32.mrb[0].mxu0
      %v486 = vpop.f32.mrb[0].mxu0
      %v487 = vadd.f32 %v368, %v486
      %v488 = vpop.f32.mrb[0].mxu0
      %489 = vmatprep.mubr.bf16.mxu0 0
      %490 = vmatmul.mubr.bf16.gmra.mrb[0].mxu0 %v399
      %v491 = vpop.f32.mrb[0].mxu0
      %v492 = vadd.f32 %v368, %v491
      %v493 = vpop.f32.mrb[0].mxu0
      %v494 = vpop.f32.mrb[0].mxu0
      %v495 = vadd.f32 %v368, %v494
      %v496 = vpop.f32.mrb[0].mxu0
      %497 = vdwg.mxu0
      %v498 = vmax.f32 %v436, 0.0
      %v499 = vmax.f32 %v439, 0.0
      %v500 = vmax.f32 %v444, 0.0
      %v501 = vmax.f32 %v447, 0.0
      %v502 = vmax.f32 %v452, 0.0
      %v503 = vmax.f32 %v455, 0.0
      %v504 = vmax.f32 %v460, 0.0
      %v505 = vmax.f32 %v463, 0.0
      %v506 = vmax.f32 %v468, 0.0
      %v507 = vmax.f32 %v471, 0.0
      %v508 = vmax.f32 %v476, 0.0
      %v509 = vmax.f32 %v479, 0.0
      %v510 = vmax.f32 %v484, 0.0
      %v511 = vmax.f32 %v487, 0.0
      %v512 = vmax.f32 %v492, 0.0
      %v513 = vmax.f32 %v495, 0.0
      %v514 = vpack.c.bf16 %v499, %v498
      %v515 = vpack.c.bf16 %v501, %v500
      %v516 = vpack.c.bf16 %v503, %v502
      %v517 = vpack.c.bf16 %v505, %v504
      %v518 = vpack.c.bf16 %v507, %v506
      %v519 = vpack.c.bf16 %v509, %v508
      %v520 = vpack.c.bf16 %v511, %v510
      %v521 = vpack.c.bf16 %v513, %v512
      %v522 = vld [vmem:[%s3] sm:$0xf]
      %v523 = vld [vmem:[%s3 + $0x4] sm:$0xf]
      %v524 = vld [vmem:[%s3 + $0x8] sm:$0xf]
      %v525 = vld [vmem:[%s3 + $0xc] sm:$0xf]
      %v526 = vld [vmem:[%s3 + $0x10] sm:$0xf]
      %v527 = vld [vmem:[%s3 + $0x14] sm:$0xf]
      %v528 = vld [vmem:[%s3 + $0x18] sm:$0xf]
      %v529 = vld [vmem:[%s3 + $0x1c] sm:$0xf]
      %v530 = vld [vmem:[%s3 + $0x20] sm:$0xf]
      %v531 = vld [vmem:[%s3 + $0x24] sm:$0xf]
      %v532 = vld [vmem:[%s3 + $0x28] sm:$0xf]
      %v533 = vld [vmem:[%s3 + $0x2c] sm:$0xf]
      %v534 = vld [vmem:[%s3 + $0x30] sm:$0xf]
      %v535 = vld [vmem:[%s3 + $0x34] sm:$0xf]
      %v536 = vld [vmem:[%s3 + $0x38] sm:$0xf]
      %v537 = vld [vmem:[%s3 + $0x3c] sm:$0xf]
      %v538 = vld [vmem:[%s4] sm:$0x1]
      %v540 = vlaneseq
      %v541 = vshrl.u32 %v540, 7
      %v542 = vsub.s32 0, %v541
      %v543 = vrot.slane %v538, %v542
      %v561 = vunpack.c.l.b16 %v522
      %v562 = vunpack.c.l.b16 %v523
      %v563 = vunpack.c.l.b16 %v524
      %v564 = vunpack.c.l.b16 %v525
      %v565 = vunpack.c.l.b16 %v526
      %v566 = vunpack.c.l.b16 %v527
      %v567 = vunpack.c.l.b16 %v528
      %v568 = vunpack.c.l.b16 %v529
      %v569 = vunpack.c.l.b16 %v530
      %v570 = vunpack.c.l.b16 %v531
      %v571 = vunpack.c.l.b16 %v532
      %v572 = vunpack.c.l.b16 %v533
      %v573 = vunpack.c.l.b16 %v534
      %v574 = vunpack.c.l.b16 %v535
      %v575 = vunpack.c.l.b16 %v536
      %v576 = vunpack.c.l.b16 %v537
      %v577 = vpack.c.b16 %v562, %v561
      %v578 = vpack.c.b16 %v564, %v563
      %v579 = vpack.c.b16 %v566, %v565
      %v580 = vpack.c.b16 %v568, %v567
      %v581 = vpack.c.b16 %v570, %v569
      %v582 = vpack.c.b16 %v572, %v571
      %v583 = vpack.c.b16 %v574, %v573
      %v584 = vpack.c.b16 %v576, %v575
      %593 = vmatprep.subr.bf16.mxu0 0
      %594 = vmatpush1.bf16.msra.mxu0 %v577
      %595 = vmatprep.subr.bf16.mxu0 0
      %596 = vmatpush1.bf16.msra.mxu0 %v578
      %597 = vmatprep.subr.bf16.mxu0 0
      %598 = vmatpush1.bf16.msra.mxu0 %v579
      %599 = vmatprep.subr.bf16.mxu0 0
      %600 = vmatpush1.bf16.msra.mxu0 %v580
      %601 = vmatprep.subr.bf16.mxu0 0
      %602 = vmatpush1.bf16.msra.mxu0 %v581
      %603 = vmatprep.subr.bf16.mxu0 0
      %604 = vmatpush1.bf16.msra.mxu0 %v582
      %605 = vmatprep.subr.bf16.mxu0 0
      %606 = vmatpush1.bf16.msra.mxu0 %v583
      %607 = vmatprep.subr.bf16.mxu0 0
      %608 = vmatpush1.bf16.msra.mxu0 %v584
      %609 = vmatprep.subr.bf16.mxu0 0
      %610 = vmatpush1.bf16.msra.mxu0 0
      %611 = vmatprep.subr.bf16.mxu0 0
      %612 = vmatpush1.bf16.msra.mxu0 0
      %613 = vmatprep.subr.bf16.mxu0 0
      %614 = vmatpush1.bf16.msra.mxu0 0
      %615 = vmatprep.subr.bf16.mxu0 0
      %616 = vmatpush1.bf16.msra.mxu0 0
      %617 = vmatprep.subr.bf16.mxu0 0
      %618 = vmatpush1.bf16.msra.mxu0 0
      %619 = vmatprep.subr.bf16.mxu0 0
      %620 = vmatpush1.bf16.msra.mxu0 0
      %621 = vmatprep.subr.bf16.mxu0 0
      %622 = vmatpush1.bf16.msra.mxu0 0
      %623 = vmatprep.subr.bf16.mxu0 0
      %624 = vmatpush1.bf16.msra.mxu0 0
      %625 = vmatprep.mubr.bf16.mxu0 0
      %626 = vmatmul.mubr.bf16.gmra.mrb[0].mxu0 %v514
      %v627 = vpop.f32.mrb[0].mxu0
      %v628 = vadd.f32 %v543, %v627
      %v629 = vpop.f32.mrb[0].mxu0
      %v630 = vpop.f32.mrb[0].mxu0
      %v631 = vadd.f32 %v543, %v630
      %v632 = vpop.f32.mrb[0].mxu0
      %633 = vmatprep.mubr.bf16.mxu0 0
      %634 = vmatmul.mubr.bf16.gmra.mrb[0].mxu0 %v515
      %v635 = vpop.f32.mrb[0].mxu0
      %v636 = vadd.f32 %v543, %v635
      %v637 = vpop.f32.mrb[0].mxu0
      %v638 = vpop.f32.mrb[0].mxu0
      %v639 = vadd.f32 %v543, %v638
      %v640 = vpop.f32.mrb[0].mxu0
      %641 = vmatprep.mubr.bf16.mxu0 0
      %642 = vmatmul.mubr.bf16.gmra.mrb[0].mxu0 %v516
      %v643 = vpop.f32.mrb[0].mxu0
      %v644 = vadd.f32 %v543, %v643
      %v645 = vpop.f32.mrb[0].mxu0
      %v646 = vpop.f32.mrb[0].mxu0
      %v647 = vadd.f32 %v543, %v646
      %v648 = vpop.f32.mrb[0].mxu0
      %649 = vmatprep.mubr.bf16.mxu0 0
      %650 = vmatmul.mubr.bf16.gmra.mrb[0].mxu0 %v517
      %v651 = vpop.f32.mrb[0].mxu0
      %v652 = vadd.f32 %v543, %v651
      %v653 = vpop.f32.mrb[0].mxu0
      %v654 = vpop.f32.mrb[0].mxu0
      %v655 = vadd.f32 %v543, %v654
      %v656 = vpop.f32.mrb[0].mxu0
      %657 = vmatprep.mubr.bf16.mxu0 0
      %658 = vmatmul.mubr.bf16.gmra.mrb[0].mxu0 %v518
      %v659 = vpop.f32.mrb[0].mxu0
      %v660 = vadd.f32 %v543, %v659
      %v661 = vpop.f32.mrb[0].mxu0
      %v662 = vpop.f32.mrb[0].mxu0
      %v663 = vadd.f32 %v543, %v662
      %v664 = vpop.f32.mrb[0].mxu0
      %665 = vmatprep.mubr.bf16.mxu0 0
      %666 = vmatmul.mubr.bf16.gmra.mrb[0].mxu0 %v519
      %v667 = vpop.f32.mrb[0].mxu0
      %v668 = vadd.f32 %v543, %v667
      %v669 = vpop.f32.mrb[0].mxu0
      %v670 = vpop.f32.mrb[0].mxu0
      %v671 = vadd.f32 %v543, %v670
      %v672 = vpop.f32.mrb[0].mxu0
      %673 = vmatprep.mubr.bf16.mxu0 0
      %674 = vmatmul.mubr.bf16.gmra.mrb[0].mxu0 %v520
      %v675 = vpop.f32.mrb[0].mxu0
      %v676 = vadd.f32 %v543, %v675
      %v677 = vpop.f32.mrb[0].mxu0
      %v678 = vpop.f32.mrb[0].mxu0
      %v679 = vadd.f32 %v543, %v678
      %v680 = vpop.f32.mrb[0].mxu0
      %681 = vmatprep.mubr.bf16.mxu0 0
      %682 = vmatmul.mubr.bf16.gmra.mrb[0].mxu0 %v521
      %v683 = vpop.f32.mrb[0].mxu0
      %v684 = vadd.f32 %v543, %v683
      %v685 = vpop.f32.mrb[0].mxu0
      %v686 = vpop.f32.mrb[0].mxu0
      %v687 = vadd.f32 %v543, %v686
      %v688 = vpop.f32.mrb[0].mxu0
      %689 = vdwg.mxu0
      %v690 = vtanh.pop %v628
      %v691 = vtanh.pop %v631
      %v692 = vtanh.pop %v636
      %v693 = vtanh.pop %v639
      %v694 = vtanh.pop %v644
      %v695 = vtanh.pop %v647
      %v696 = vtanh.pop %v652
      %v697 = vtanh.pop %v655
      %v698 = vtanh.pop %v660
      %v699 = vtanh.pop %v663
      %v700 = vtanh.pop %v668
      %v701 = vtanh.pop %v671
      %v702 = vtanh.pop %v676
      %v703 = vtanh.pop %v679
      %v704 = vtanh.pop %v684
      %v705 = vtanh.pop %v687
      %v706 = vpack.c.bf16 %v691, %v690
      %v707 = vpack.c.bf16 %v693, %v692
      %v708 = vpack.c.bf16 %v695, %v694
      %v709 = vpack.c.bf16 %v697, %v696
      %v710 = vpack.c.bf16 %v699, %v698
      %v711 = vpack.c.bf16 %v701, %v700
      %v712 = vpack.c.bf16 %v703, %v702
      %v713 = vpack.c.bf16 %v705, %v704
      %v714 = vld [vmem:[%s5] sm:$0xf]
      %v715 = vld [vmem:[%s5 + $0x4] sm:$0xf]
      %v716 = vld [vmem:[%s5 + $0x8] sm:$0xf]
      %v717 = vld [vmem:[%s5 + $0xc] sm:$0xf]
      %v718 = vld [vmem:[%s5 + $0x10] sm:$0xf]
      %v719 = vld [vmem:[%s5 + $0x14] sm:$0xf]
      %v720 = vld [vmem:[%s5 + $0x18] sm:$0xf]
      %v721 = vld [vmem:[%s5 + $0x1c] sm:$0xf]
      %v722 = vld [vmem:[%s5 + $0x20] sm:$0xf]
      %v723 = vld [vmem:[%s5 + $0x24] sm:$0xf]
      %v724 = vld [vmem:[%s5 + $0x28] sm:$0xf]
      %v725 = vld [vmem:[%s5 + $0x2c] sm:$0xf]
      %v726 = vld [vmem:[%s5 + $0x30] sm:$0xf]
      %v727 = vld [vmem:[%s5 + $0x34] sm:$0xf]
      %v728 = vld [vmem:[%s5 + $0x38] sm:$0xf]
      %v729 = vld [vmem:[%s5 + $0x3c] sm:$0xf]
      %v730 = vld [vmem:[%s6] sm:$0x1]
      %v732 = vlaneseq
      %v733 = vshrl.u32 %v732, 7
      %v734 = vsub.s32 0, %v733
      %v735 = vrot.slane %v730, %v734
      %v753 = vunpack.c.l.b16 %v714
      %v754 = vunpack.c.l.b16 %v715
      %v755 = vunpack.c.l.b16 %v716
      %v756 = vunpack.c.l.b16 %v717
      %v757 = vunpack.c.l.b16 %v718
      %v758 = vunpack.c.l.b16 %v719
      %v759 = vunpack.c.l.b16 %v720
      %v760 = vunpack.c.l.b16 %v721
      %v761 = vunpack.c.l.b16 %v722
      %v762 = vunpack.c.l.b16 %v723
      %v763 = vunpack.c.l.b16 %v724
      %v764 = vunpack.c.l.b16 %v725
      %v765 = vunpack.c.l.b16 %v726
      %v766 = vunpack.c.l.b16 %v727
      %v767 = vunpack.c.l.b16 %v728
      %v768 = vunpack.c.l.b16 %v729
      %v769 = vpack.c.b16 %v754, %v753
      %v770 = vpack.c.b16 %v756, %v755
      %v771 = vpack.c.b16 %v758, %v757
      %v772 = vpack.c.b16 %v760, %v759
      %v773 = vpack.c.b16 %v762, %v761
      %v774 = vpack.c.b16 %v764, %v763
      %v775 = vpack.c.b16 %v766, %v765
      %v776 = vpack.c.b16 %v768, %v767
      %785 = vmatprep.subr.bf16.mxu0 0
      %786 = vmatpush1.bf16.msra.mxu0 %v769
      %787 = vmatprep.subr.bf16.mxu0 0
      %788 = vmatpush1.bf16.msra.mxu0 %v770
      %789 = vmatprep.subr.bf16.mxu0 0
      %790 = vmatpush1.bf16.msra.mxu0 %v771
      %791 = vmatprep.subr.bf16.mxu0 0
      %792 = vmatpush1.bf16.msra.mxu0 %v772
      %793 = vmatprep.subr.bf16.mxu0 0
      %794 = vmatpush1.bf16.msra.mxu0 %v773
      %795 = vmatprep.subr.bf16.mxu0 0
      %796 = vmatpush1.bf16.msra.mxu0 %v774
      %797 = vmatprep.subr.bf16.mxu0 0
      %798 = vmatpush1.bf16.msra.mxu0 %v775
      %799 = vmatprep.subr.bf16.mxu0 0
      %800 = vmatpush1.bf16.msra.mxu0 %v776
      %801 = vmatprep.subr.bf16.mxu0 0
      %802 = vmatpush1.bf16.msra.mxu0 0
      %803 = vmatprep.subr.bf16.mxu0 0
      %804 = vmatpush1.bf16.msra.mxu0 0
      %805 = vmatprep.subr.bf16.mxu0 0
      %806 = vmatpush1.bf16.msra.mxu0 0
      %807 = vmatprep.subr.bf16.mxu0 0
      %808 = vmatpush1.bf16.msra.mxu0 0
      %809 = vmatprep.subr.bf16.mxu0 0
      %810 = vmatpush1.bf16.msra.mxu0 0
      %811 = vmatprep.subr.bf16.mxu0 0
      %812 = vmatpush1.bf16.msra.mxu0 0
      %813 = vmatprep.subr.bf16.mxu0 0
      %814 = vmatpush1.bf16.msra.mxu0 0
      %815 = vmatprep.subr.bf16.mxu0 0
      %816 = vmatpush1.bf16.msra.mxu0 0
      %817 = vmatprep.mubr.bf16.mxu0 0
      %818 = vmatmul.mubr.bf16.gmra.mrb[0].mxu0 %v706
      %v819 = vpop.f32.mrb[0].mxu0
      %v820 = vadd.f32 %v735, %v819
      %v821 = vpop.f32.mrb[0].mxu0
      %v822 = vpop.f32.mrb[0].mxu0
      %v823 = vadd.f32 %v735, %v822
      %v824 = vpop.f32.mrb[0].mxu0
      %825 = vmatprep.mubr.bf16.mxu0 0
      %826 = vmatmul.mubr.bf16.gmra.mrb[0].mxu0 %v707
      %v827 = vpop.f32.mrb[0].mxu0
      %v828 = vadd.f32 %v735, %v827
      %v829 = vpop.f32.mrb[0].mxu0
      %v830 = vpop.f32.mrb[0].mxu0
      %v831 = vadd.f32 %v735, %v830
      %v832 = vpop.f32.mrb[0].mxu0
      %833 = vmatprep.mubr.bf16.mxu0 0
      %834 = vmatmul.mubr.bf16.gmra.mrb[0].mxu0 %v708
      %v835 = vpop.f32.mrb[0].mxu0
      %v836 = vadd.f32 %v735, %v835
      %v837 = vpop.f32.mrb[0].mxu0
      %v838 = vpop.f32.mrb[0].mxu0
      %v839 = vadd.f32 %v735, %v838
      %v840 = vpop.f32.mrb[0].mxu0
      %841 = vmatprep.mubr.bf16.mxu0 0
      %842 = vmatmul.mubr.bf16.gmra.mrb[0].mxu0 %v709
      %v843 = vpop.f32.mrb[0].mxu0
      %v844 = vadd.f32 %v735, %v843
      %v845 = vpop.f32.mrb[0].mxu0
      %v846 = vpop.f32.mrb[0].mxu0
      %v847 = vadd.f32 %v735, %v846
      %v848 = vpop.f32.mrb[0].mxu0
      %849 = vmatprep.mubr.bf16.mxu0 0
      %850 = vmatmul.mubr.bf16.gmra.mrb[0].mxu0 %v710
      %v851 = vpop.f32.mrb[0].mxu0
      %v852 = vadd.f32 %v735, %v851
      %v853 = vpop.f32.mrb[0].mxu0
      %v854 = vpop.f32.mrb[0].mxu0
      %v855 = vadd.f32 %v735, %v854
      %v856 = vpop.f32.mrb[0].mxu0
      %857 = vmatprep.mubr.bf16.mxu0 0
      %858 = vmatmul.mubr.bf16.gmra.mrb[0].mxu0 %v711
      %v859 = vpop.f32.mrb[0].mxu0
      %v860 = vadd.f32 %v735, %v859
      %v861 = vpop.f32.mrb[0].mxu0
      %v862 = vpop.f32.mrb[0].mxu0
      %v863 = vadd.f32 %v735, %v862
      %v864 = vpop.f32.mrb[0].mxu0
      %865 = vmatprep.mubr.bf16.mxu0 0
      %866 = vmatmul.mubr.bf16.gmra.mrb[0].mxu0 %v712
      %v867 = vpop.f32.mrb[0].mxu0
      %v868 = vadd.f32 %v735, %v867
      %v869 = vpop.f32.mrb[0].mxu0
      %v870 = vpop.f32.mrb[0].mxu0
      %v871 = vadd.f32 %v735, %v870
      %v872 = vpop.f32.mrb[0].mxu0
      %873 = vmatprep.mubr.bf16.mxu0 0
      %874 = vmatmul.mubr.bf16.gmra.mrb[0].mxu0 %v713
      %v875 = vpop.f32.mrb[0].mxu0
      %v876 = vadd.f32 %v735, %v875
      %v877 = vpop.f32.mrb[0].mxu0
      %v878 = vpop.f32.mrb[0].mxu0
      %v879 = vadd.f32 %v735, %v878
      %v880 = vpop.f32.mrb[0].mxu0
      %881 = vdwg.mxu0
      %v882 = vtanh.pop %v820
      %v883 = vtanh.pop %v823
      %v884 = vtanh.pop %v828
      %v885 = vtanh.pop %v831
      %v886 = vtanh.pop %v836
      %v887 = vtanh.pop %v839
      %v888 = vtanh.pop %v844
      %v889 = vtanh.pop %v847
      %v890 = vtanh.pop %v852
      %v891 = vtanh.pop %v855
      %v892 = vtanh.pop %v860
      %v893 = vtanh.pop %v863
      %v894 = vtanh.pop %v868
      %v895 = vtanh.pop %v871
      %v896 = vtanh.pop %v876
      %v897 = vtanh.pop %v879
      %v898 = vpack.c.bf16 %v883, %v882
      %v899 = vpack.c.bf16 %v885, %v884
      %v900 = vpack.c.bf16 %v887, %v886
      %v901 = vpack.c.bf16 %v889, %v888
      %v902 = vpack.c.bf16 %v891, %v890
      %v903 = vpack.c.bf16 %v893, %v892
      %v904 = vpack.c.bf16 %v895, %v894
      %v905 = vpack.c.bf16 %v897, %v896
      %v906 = vld [vmem:[%s7] sm:$0xf]
      %v907 = vld [vmem:[%s7 + $0x4] sm:$0xf]
      %v908 = vld [vmem:[%s7 + $0x8] sm:$0xf]
      %v909 = vld [vmem:[%s7 + $0xc] sm:$0xf]
      %v910 = vld [vmem:[%s7 + $0x10] sm:$0xf]
      %v911 = vld [vmem:[%s7 + $0x14] sm:$0xf]
      %v912 = vld [vmem:[%s7 + $0x18] sm:$0xf]
      %v913 = vld [vmem:[%s7 + $0x1c] sm:$0xf]
      %v914 = vld [vmem:[%s7 + $0x20] sm:$0xf]
      %v915 = vld [vmem:[%s7 + $0x24] sm:$0xf]
      %v916 = vld [vmem:[%s7 + $0x28] sm:$0xf]
      %v917 = vld [vmem:[%s7 + $0x2c] sm:$0xf]
      %v918 = vld [vmem:[%s7 + $0x30] sm:$0xf]
      %v919 = vld [vmem:[%s7 + $0x34] sm:$0xf]
      %v920 = vld [vmem:[%s7 + $0x38] sm:$0xf]
      %v921 = vld [vmem:[%s7 + $0x3c] sm:$0xf]
      %v922 = vld [vmem:[%s8] sm:$0x1]
      %v924 = vlaneseq
      %v925 = vshrl.u32 %v924, 7
      %v926 = vsub.s32 0, %v925
      %v927 = vrot.slane %v922, %v926
      %v945 = vunpack.c.l.b16 %v906
      %v946 = vunpack.c.l.b16 %v907
      %v947 = vunpack.c.l.b16 %v908
      %v948 = vunpack.c.l.b16 %v909
      %v949 = vunpack.c.l.b16 %v910
      %v950 = vunpack.c.l.b16 %v911
      %v951 = vunpack.c.l.b16 %v912
      %v952 = vunpack.c.l.b16 %v913
      %v953 = vunpack.c.l.b16 %v914
      %v954 = vunpack.c.l.b16 %v915
      %v955 = vunpack.c.l.b16 %v916
      %v956 = vunpack.c.l.b16 %v917
      %v957 = vunpack.c.l.b16 %v918
      %v958 = vunpack.c.l.b16 %v919
      %v959 = vunpack.c.l.b16 %v920
      %v960 = vunpack.c.l.b16 %v921
      %v961 = vpack.c.b16 %v946, %v945
      %v962 = vpack.c.b16 %v948, %v947
      %v963 = vpack.c.b16 %v950, %v949
      %v964 = vpack.c.b16 %v952, %v951
      %v965 = vpack.c.b16 %v954, %v953
      %v966 = vpack.c.b16 %v956, %v955
      %v967 = vpack.c.b16 %v958, %v957
      %v968 = vpack.c.b16 %v960, %v959
      %977 = vmatprep.subr.bf16.mxu0 0
      %978 = vmatpush1.bf16.msra.mxu0 %v961
      %979 = vmatprep.subr.bf16.mxu0 0
      %980 = vmatpush1.bf16.msra.mxu0 %v962
      %981 = vmatprep.subr.bf16.mxu0 0
      %982 = vmatpush1.bf16.msra.mxu0 %v963
      %983 = vmatprep.subr.bf16.mxu0 0
      %984 = vmatpush1.bf16.msra.mxu0 %v964
      %985 = vmatprep.subr.bf16.mxu0 0
      %986 = vmatpush1.bf16.msra.mxu0 %v965
      %987 = vmatprep.subr.bf16.mxu0 0
      %988 = vmatpush1.bf16.msra.mxu0 %v966
      %989 = vmatprep.subr.bf16.mxu0 0
      %990 = vmatpush1.bf16.msra.mxu0 %v967
      %991 = vmatprep.subr.bf16.mxu0 0
      %992 = vmatpush1.bf16.msra.mxu0 %v968
      %993 = vmatprep.subr.bf16.mxu0 0
      %994 = vmatpush1.bf16.msra.mxu0 0
      %995 = vmatprep.subr.bf16.mxu0 0
      %996 = vmatpush1.bf16.msra.mxu0 0
      %997 = vmatprep.subr.bf16.mxu0 0
      %998 = vmatpush1.bf16.msra.mxu0 0
      %999 = vmatprep.subr.bf16.mxu0 0
      %1000 = vmatpush1.bf16.msra.mxu0 0
      %1001 = vmatprep.subr.bf16.mxu0 0
      %1002 = vmatpush1.bf16.msra.mxu0 0
      %1003 = vmatprep.subr.bf16.mxu0 0
      %1004 = vmatpush1.bf16.msra.mxu0 0
      %1005 = vmatprep.subr.bf16.mxu0 0
      %1006 = vmatpush1.bf16.msra.mxu0 0
      %1007 = vmatprep.subr.bf16.mxu0 0
      %1008 = vmatpush1.bf16.msra.mxu0 0
      %1009 = vmatprep.mubr.bf16.mxu0 0
      %1010 = vmatmul.mubr.bf16.gmra.mrb[0].mxu0 %v898
      %v1011 = vpop.f32.mrb[0].mxu0
      %v1012 = vadd.f32 %v927, %v1011
      %v1013 = vpop.f32.mrb[0].mxu0
      %v1014 = vpop.f32.mrb[0].mxu0
      %v1015 = vadd.f32 %v927, %v1014
      %v1016 = vpop.f32.mrb[0].mxu0
      %1017 = vmatprep.mubr.bf16.mxu0 0
      %1018 = vmatmul.mubr.bf16.gmra.mrb[0].mxu0 %v899
      %v1019 = vpop.f32.mrb[0].mxu0
      %v1020 = vadd.f32 %v927, %v1019
      %v1021 = vpop.f32.mrb[0].mxu0
      %v1022 = vpop.f32.mrb[0].mxu0
      %v1023 = vadd.f32 %v927, %v1022
      %v1024 = vpop.f32.mrb[0].mxu0
      %1025 = vmatprep.mubr.bf16.mxu0 0
      %1026 = vmatmul.mubr.bf16.gmra.mrb[0].mxu0 %v900
      %v1027 = vpop.f32.mrb[0].mxu0
      %v1028 = vadd.f32 %v927, %v1027
      %v1029 = vpop.f32.mrb[0].mxu0
      %v1030 = vpop.f32.mrb[0].mxu0
      %v1031 = vadd.f32 %v927, %v1030
      %v1032 = vpop.f32.mrb[0].mxu0
      %1033 = vmatprep.mubr.bf16.mxu0 0
      %1034 = vmatmul.mubr.bf16.gmra.mrb[0].mxu0 %v901
      %v1035 = vpop.f32.mrb[0].mxu0
      %v1036 = vadd.f32 %v927, %v1035
      %v1037 = vpop.f32.mrb[0].mxu0
      %v1038 = vpop.f32.mrb[0].mxu0
      %v1039 = vadd.f32 %v927, %v1038
      %v1040 = vpop.f32.mrb[0].mxu0
      %1041 = vmatprep.mubr.bf16.mxu0 0
      %1042 = vmatmul.mubr.bf16.gmra.mrb[0].mxu0 %v902
      %v1043 = vpop.f32.mrb[0].mxu0
      %v1044 = vadd.f32 %v927, %v1043
      %v1045 = vpop.f32.mrb[0].mxu0
      %v1046 = vpop.f32.mrb[0].mxu0
      %v1047 = vadd.f32 %v927, %v1046
      %v1048 = vpop.f32.mrb[0].mxu0
      %1049 = vmatprep.mubr.bf16.mxu0 0
      %1050 = vmatmul.mubr.bf16.gmra.mrb[0].mxu0 %v903
      %v1051 = vpop.f32.mrb[0].mxu0
      %v1052 = vadd.f32 %v927, %v1051
      %v1053 = vpop.f32.mrb[0].mxu0
      %v1054 = vpop.f32.mrb[0].mxu0
      %v1055 = vadd.f32 %v927, %v1054
      %v1056 = vpop.f32.mrb[0].mxu0
      %1057 = vmatprep.mubr.bf16.mxu0 0
      %1058 = vmatmul.mubr.bf16.gmra.mrb[0].mxu0 %v904
      %v1059 = vpop.f32.mrb[0].mxu0
      %v1060 = vadd.f32 %v927, %v1059
      %v1061 = vpop.f32.mrb[0].mxu0
      %v1062 = vpop.f32.mrb[0].mxu0
      %v1063 = vadd.f32 %v927, %v1062
      %v1064 = vpop.f32.mrb[0].mxu0
      %1065 = vmatprep.mubr.bf16.mxu0 0
      %1066 = vmatmul.mubr.bf16.gmra.mrb[0].mxu0 %v905
      %v1067 = vpop.f32.mrb[0].mxu0
      %v1068 = vadd.f32 %v927, %v1067
      %v1069 = vpop.f32.mrb[0].mxu0
      %v1070 = vpop.f32.mrb[0].mxu0
      %v1071 = vadd.f32 %v927, %v1070
      %v1072 = vpop.f32.mrb[0].mxu0
      %1073 = vdwg.mxu0
      %v1074 = vmin.f32 %v1012, 0.0
      %v1075 = vmin.f32 %v1015, 0.0
      %v1076 = vmin.f32 %v1020, 0.0
      %v1077 = vmin.f32 %v1023, 0.0
      %v1078 = vmin.f32 %v1028, 0.0
      %v1079 = vmin.f32 %v1031, 0.0
      %v1080 = vmin.f32 %v1036, 0.0
      %v1081 = vmin.f32 %v1039, 0.0
      %v1082 = vmin.f32 %v1044, 0.0
      %v1083 = vmin.f32 %v1047, 0.0
      %v1084 = vmin.f32 %v1052, 0.0
      %v1085 = vmin.f32 %v1055, 0.0
      %v1086 = vmin.f32 %v1060, 0.0
      %v1087 = vmin.f32 %v1063, 0.0
      %v1088 = vmin.f32 %v1068, 0.0
      %v1089 = vmin.f32 %v1071, 0.0
      %v1090 = vmul.f32 %v1074, 1.442695
      %v1091 = vpow.pop %v1090
      %v1092 = vmul.f32 %v1075, 1.442695
      %v1093 = vpow.pop %v1092
      %v1094 = vmul.f32 %v1076, 1.442695
      %v1095 = vpow.pop %v1094
      %v1096 = vmul.f32 %v1077, 1.442695
      %v1097 = vpow.pop %v1096
      %v1098 = vmul.f32 %v1078, 1.442695
      %v1099 = vpow.pop %v1098
      %v1100 = vmul.f32 %v1079, 1.442695
      %v1101 = vpow.pop %v1100
      %v1102 = vmul.f32 %v1080, 1.442695
      %v1103 = vpow.pop %v1102
      %v1104 = vmul.f32 %v1081, 1.442695
      %v1105 = vpow.pop %v1104
      %v1106 = vmul.f32 %v1082, 1.442695
      %v1107 = vpow.pop %v1106
      %v1108 = vmul.f32 %v1083, 1.442695
      %v1109 = vpow.pop %v1108
      %v1110 = vmul.f32 %v1084, 1.442695
      %v1111 = vpow.pop %v1110
      %v1112 = vmul.f32 %v1085, 1.442695
      %v1113 = vpow.pop %v1112
      %v1114 = vmul.f32 %v1086, 1.442695
      %v1115 = vpow.pop %v1114
      %v1116 = vmul.f32 %v1087, 1.442695
      %v1117 = vpow.pop %v1116
      %v1118 = vmul.f32 %v1088, 1.442695
      %v1119 = vpow.pop %v1118
      %v1120 = vmul.f32 %v1089, 1.442695
      %v1121 = vpow.pop %v1120
      %v1122 = vsub.f32 %v1091, 1.0
      %v1123 = vsub.f32 %v1093, 1.0
      %v1124 = vsub.f32 %v1095, 1.0
      %v1125 = vsub.f32 %v1097, 1.0
      %v1126 = vsub.f32 %v1099, 1.0
      %v1127 = vsub.f32 %v1101, 1.0
      %v1128 = vsub.f32 %v1103, 1.0
      %v1129 = vsub.f32 %v1105, 1.0
      %v1130 = vsub.f32 %v1107, 1.0
      %v1131 = vsub.f32 %v1109, 1.0
      %v1132 = vsub.f32 %v1111, 1.0
      %v1133 = vsub.f32 %v1113, 1.0
      %v1134 = vsub.f32 %v1115, 1.0
      %v1135 = vsub.f32 %v1117, 1.0
      %v1136 = vsub.f32 %v1119, 1.0
      %v1137 = vsub.f32 %v1121, 1.0
      %vm1138 = vcmp.gt.f32.partialorder %v1012, 0.0
      %vm1139 = vcmp.gt.f32.partialorder %v1015, 0.0
      %vm1140 = vcmp.gt.f32.partialorder %v1020, 0.0
      %vm1141 = vcmp.gt.f32.partialorder %v1023, 0.0
      %vm1142 = vcmp.gt.f32.partialorder %v1028, 0.0
      %vm1143 = vcmp.gt.f32.partialorder %v1031, 0.0
      %vm1144 = vcmp.gt.f32.partialorder %v1036, 0.0
      %vm1145 = vcmp.gt.f32.partialorder %v1039, 0.0
      %vm1146 = vcmp.gt.f32.partialorder %v1044, 0.0
      %vm1147 = vcmp.gt.f32.partialorder %v1047, 0.0
      %vm1148 = vcmp.gt.f32.partialorder %v1052, 0.0
      %vm1149 = vcmp.gt.f32.partialorder %v1055, 0.0
      %vm1150 = vcmp.gt.f32.partialorder %v1060, 0.0
      %vm1151 = vcmp.gt.f32.partialorder %v1063, 0.0
      %vm1152 = vcmp.gt.f32.partialorder %v1068, 0.0
      %vm1153 = vcmp.gt.f32.partialorder %v1071, 0.0
      %v1154 = vsel %vm1138, %v1012, %v1122
      %v1155 = vsel %vm1139, %v1015, %v1123
      %v1156 = vsel %vm1140, %v1020, %v1124
      %v1157 = vsel %vm1141, %v1023, %v1125
      %v1158 = vsel %vm1142, %v1028, %v1126
      %v1159 = vsel %vm1143, %v1031, %v1127
      %v1160 = vsel %vm1144, %v1036, %v1128
      %v1161 = vsel %vm1145, %v1039, %v1129
      %v1162 = vsel %vm1146, %v1044, %v1130
      %v1163 = vsel %vm1147, %v1047, %v1131
      %v1164 = vsel %vm1148, %v1052, %v1132
      %v1165 = vsel %vm1149, %v1055, %v1133
      %v1166 = vsel %vm1150, %v1060, %v1134
      %v1167 = vsel %vm1151, %v1063, %v1135
      %v1168 = vsel %vm1152, %v1068, %v1136
      %v1169 = vsel %vm1153, %v1071, %v1137
      %vm1170 = vcmask 15360
      %1171 = vst.msk [vmem:[%s334] sm:$0xff] %vm1170, %v1154
      %1172 = vst.msk [vmem:[%s334 + $0x8] sm:$0xff] %vm1170, %v1155
      %1173 = vst.msk [vmem:[%s334 + $0x10] sm:$0xff] %vm1170, %v1156
      %1174 = vst.msk [vmem:[%s334 + $0x18] sm:$0xff] %vm1170, %v1157
      %1175 = vst.msk [vmem:[%s334 + $0x20] sm:$0xff] %vm1170, %v1158
      %1176 = vst.msk [vmem:[%s334 + $0x28] sm:$0xff] %vm1170, %v1159
      %1177 = vst.msk [vmem:[%s334 + $0x30] sm:$0xff] %vm1170, %v1160
      %1178 = vst.msk [vmem:[%s334 + $0x38] sm:$0xff] %vm1170, %v1161
      %1179 = vst.msk [vmem:[%s334 + $0x40] sm:$0xff] %vm1170, %v1162
      %1180 = vst.msk [vmem:[%s334 + $0x48] sm:$0xff] %vm1170, %v1163
      %1181 = vst.msk [vmem:[%s334 + $0x50] sm:$0xff] %vm1170, %v1164
      %1182 = vst.msk [vmem:[%s334 + $0x58] sm:$0xff] %vm1170, %v1165
      %1183 = vst.msk [vmem:[%s334 + $0x60] sm:$0xff] %vm1170, %v1166
      %1184 = vst.msk [vmem:[%s334 + $0x68] sm:$0xff] %vm1170, %v1167
      %1185 = vst.msk [vmem:[%s334 + $0x70] sm:$0xff] %vm1170, %v1168
      %1186 = vst.msk [vmem:[%s334 + $0x78] sm:$0xff] %vm1170, %v1169
      %s1187 = smul.u32 16, %s20
      %p1188 = scmp.lt.s32.totalorder %s1187, 31
      %s1189 = scalar_select %p1188, %s1187, 31
      %s1190 = smul.addr %s1189, 8
      %s1191 = scalar_lea.vmem %s9, %s1190
      // Predicated region
      $region57: #{_forward.1} parent=55 // pred_check
        %p1192 = pneg %p232
      $region58: #{_forward.1} parent=55 // pred_check_branch
        %1194 = sbr.rel (%p1192) target = $region60
      $region59: #{_forward.1} parent=55 // pred_region
        %s1195 = smul.u32 16, %s20
      $region60: #{_forward.1} parent=55 // pred_fallthru
        _
    $region56: #{_forward.1} parent=5 // pred_fallthru
      _
    %p1196 = scmp.le.s32.totalorder 2, %s15
    // Predicated region
    $region61: #{_forward.1} parent=5 // pred_check
      %p1197 = pneg %p1196
    $region62: #{_forward.1} parent=5 // pred_check_branch
      %1199 = sbr.rel (%p1197) target = $region64
    $region63: #{_forward.1} parent=5 // pred_region
      %s1200 = ssub.s32 %s15, 2
      // Predicated region
      $region65: #{_forward.1} parent=63 // pred_check
        %p1201 = pneg %p238
      $region66: #{_forward.1} parent=63 // pred_check_branch
        %1203 = sbr.rel (%p1201) target = $region68
      $region67: #{_forward.1} parent=63 // pred_region
        %s1204 = smul.u32 16, %s21
        %p1205 = scmp.lt.s32.totalorder %s1204, 31
        %s1206 = scalar_select %p1205, %s1204, 31
        %s1207 = smul.addr %s1206, 8
        %s1208 = scalar_lea.vmem %s9, %s1207
      $region68: #{_forward.1} parent=63 // pred_fallthru
        _
    $region64: #{_forward.1} parent=5 // pred_fallthru
      _
  $region6: #{_forward.1} parent=0 // loop_footer
    %s19 = sadd.s32 1, %s15
  $region7: #{_forward.1} parent=0 // loop_footer_branch
    %14 = sbr.rel target = $region3
  $region8: #{_forward.1} parent=0 // loop_exit
    _

</llo_original>
